<compile_context>
chip_gen: v7x
topology: tpu7x:2x2x1
jax: 0.10.0
libtpu: 0.0.40
codegen_flags: <defaults>
</compile_context>

<pallas_src>
import functools
import math

import jax
import jax.numpy as jnp
from jax.experimental import pallas as pl
from jax.experimental.pallas import tpu as pltpu


def _round_up(x: int, m: int) -> int:
    return ((x + m - 1) // m) * m


# ---------------------------------------------------------------------------
# Fused kernel: build W tile once per N-tile, then stream batch tiles.
# Grid = (N_tiles, M_tiles); M (batch) is the innermost, "arbitrary" axis.
# ---------------------------------------------------------------------------
def _outer_linear_kernel(x_ref, w1_ref, w2_ref, *rest,
                         cos_coefficient, rank, has_bias):
    if has_bias:
        b_ref, o_ref, w_scratch = rest
    else:
        o_ref, w_scratch = rest

    # Build this N-tile's weight block exactly once (first batch step).
    # Product + cos in f32 (large phase), stored in the compute dtype
    # (bf16 by default -> fast MXU path + half the VMEM / load bytes).
    @pl.when(pl.program_id(1) == 0)
    def _():
        w1 = w1_ref[...].astype(jnp.float32)
        w2 = w2_ref[...].astype(jnp.float32)
        if rank == 1:
            # (K,1)*(1,tn) broadcast outer product -> pure VPU, no degenerate
            # MXU matmul.
            prod = w1 * w2
        else:
            prod = jnp.dot(w1, w2, preferred_element_type=jnp.float32)
        w_scratch[...] = jnp.cos(cos_coefficient * prod).astype(w_scratch.dtype)

    xv = x_ref[...]
    if xv.dtype != w_scratch.dtype:
        xv = xv.astype(w_scratch.dtype)          # in-kernel cast (VPU)
    acc = jnp.dot(xv, w_scratch[...], preferred_element_type=jnp.float32)
    if has_bias:
        acc = acc + b_ref[...]                   # (1, tn) broadcast over rows
    o_ref[...] = acc.astype(o_ref.dtype)         # emit directly in caller dtype


# ---------------------------------------------------------------------------
# Wrapper
# ---------------------------------------------------------------------------
def outer_linear_pallas(x, w1, w2, b=None, *, cos_coefficient: float = 80.0,
                        tm: int = 512, tn: int | None = None,
                        compute_dtype=jnp.bfloat16):
    """x: (M, in_features), w1: (in_features, rank), w2: (rank, out_features),
    b: (out_features,) or None.  Returns (M, out_features) in x.dtype."""
    M, K = x.shape
    Kw, rank = w1.shape
    rank2, N = w2.shape
    assert Kw == K and rank2 == rank, "parameter shape mismatch"

    # Batch tile: as large as reasonable, multiple of 8 ((8,128) rule),
    # clamped to the batch.  Ragged last tile handled by Pallas (no padding).
    tm = _round_up(max(8, min(int(tm), M)), 8)

    # Out-feature tile: keep full N resident when small, otherwise 512 lanes
    # (multiple of 128) so the W scratch / W2 / bias blocks stay bounded.
    if tn is None:
        tn = N if N <= 2048 else 512
    tn = int(tn)
    if tn != N:
        tn = max(128, _round_up(min(tn, N), 128))

    n_n = pl.cdiv(N, tn)
    n_m = pl.cdiv(M, tm)

    has_bias = b is not None

    in_specs = [
        pl.BlockSpec((tm, K), lambda j, m: (m, 0)),     # x tile (streamed)
        pl.BlockSpec((K, rank), lambda j, m: (0, 0)),   # W1 (resident)
        pl.BlockSpec((rank, tn), lambda j, m: (0, j)),  # W2 column tile
    ]
    inputs = [x, w1, w2]
    if has_bias:
        in_specs.append(pl.BlockSpec((1, tn), lambda j, m: (0, j)))  # bias
        inputs.append(jnp.asarray(b, jnp.float32).reshape(1, N))

    out_shape = jax.ShapeDtypeStruct((M, N), x.dtype)   # no post-convert pass
    out_spec = pl.BlockSpec((tm, tn), lambda j, m: (m, j))

    # VMEM budget; raise the scoped limit only when the default (16 MiB on
    # v5e) would not hold the double-buffered tiles + resident W scratch.
    xbytes = jnp.dtype(x.dtype).itemsize
    cbytes = jnp.dtype(compute_dtype).itemsize
    pbytes = jnp.dtype(w1.dtype).itemsize
    est = (2 * tm * K * xbytes                           # x double buffer
           + 2 * K * rank * pbytes + 2 * rank * tn * pbytes
           + (2 * tn * 4 if has_bias else 0)
           + K * tn * cbytes                             # W scratch
           + 2 * tm * tn * xbytes)                       # output double buffer
    vmem_limit = None
    if est > 16 * 1024 * 1024:
        vmem_limit = int(min(100 * 1024 * 1024, (est * 3) // 2))

    kernel = functools.partial(
        _outer_linear_kernel,
        cos_coefficient=float(cos_coefficient),
        rank=int(rank),
        has_bias=has_bias,
    )

    return pl.pallas_call(
        kernel,
        out_shape=out_shape,
        grid=(n_n, n_m),
        in_specs=in_specs,
        out_specs=out_spec,
        scratch_shapes=[pltpu.VMEM((K, tn), compute_dtype)],
        compiler_params=pltpu.CompilerParams(
            # N-tile axis may megacore-shard; the batch axis MUST stay
            # "arbitrary" because the W scratch is built at batch step 0.
            dimension_semantics=("parallel", "arbitrary"),
            vmem_limit_bytes=vmem_limit,
        ),
        cost_estimate=pl.CostEstimate(
            flops=2 * M * N * K + 2 * K * rank * N,
            transcendentals=K * N,
            bytes_accessed=(M * K + M * N) * xbytes
                           + (K * rank + rank * N) * pbytes
                           + (N * 4 if has_bias else 0),
        ),
    )(*inputs)


if __name__ == "__main__":
    # Shapes consistent with the module: in_features=32, out_features=32,
    # rank=1 (default), cos_coefficient=80, zero bias.
    in_features, out_features = 32, 32
    cos_coefficient = 80.0

    key = jax.random.PRNGKey(0)
    k1, k2, k3, kx1, kx2, kx3 = jax.random.split(key, 6)

    W1 = jax.random.uniform(k1, (in_features, 1), jnp.float32,
                            minval=-math.pi / 2, maxval=math.pi / 2)
    W2 = jax.random.uniform(k2, (1, out_features), jnp.float32,
                            minval=-math.pi / 2, maxval=math.pi / 2)
    bias = jnp.zeros((out_features,), jnp.float32)
    W_ref = jnp.cos(cos_coefficient * (W1 @ W2))

    # Check 1: small batch, with bias, f32 compute path.
    x1 = jax.random.normal(kx1, (8, in_features), jnp.float32)
    y1 = jax.block_until_ready(
        outer_linear_pallas(x1, W1, W2, bias, cos_coefficient=cos_coefficient,
                            compute_dtype=jnp.float32))
    y1_ref = x1 @ W_ref + bias
    assert y1.dtype == x1.dtype
    assert jnp.allclose(y1, y1_ref, atol=5e-2, rtol=2e-2), "mismatch (check 1)"

    # Check 2: ragged batch (300) over several tiles, no bias, bf16 feed
    # (default compute_dtype) -> looser tolerance vs f32 reference.
    x2 = jax.random.normal(kx2, (300, in_features), jnp.float32)
    y2 = jax.block_until_ready(
        outer_linear_pallas(x2, W1, W2, None, cos_coefficient=cos_coefficient,
                            tm=128))
    y2_ref = x2 @ W_ref
    assert y2.shape == (300, out_features)
    assert jnp.allclose(y2, y2_ref, atol=3e-1, rtol=5e-2), "mismatch (check 2)"

    # Check 3: rank > 1 path (MXU weight product), default large tile, f32.
    rank = 4
    W1r = jax.random.uniform(k3, (in_features, rank), jnp.float32,
                             minval=-math.pi / 2, maxval=math.pi / 2)
    W2r = jax.random.uniform(k2, (rank, out_features), jnp.float32,
                             minval=-math.pi / 2, maxval=math.pi / 2)
    W_ref_r = jnp.cos(cos_coefficient * (W1r @ W2r))
    x3 = jax.random.normal(kx3, (256, in_features), jnp.float32)
    y3 = jax.block_until_ready(
        outer_linear_pallas(x3, W1r, W2r, bias, cos_coefficient=cos_coefficient,
                            compute_dtype=jnp.float32))
    y3_ref = x3 @ W_ref_r + bias
    assert jnp.allclose(y3, y3_ref, atol=5e-2, rtol=2e-2), "mismatch (check 3)"

    print("KERNEL_OK")
</pallas_src>

<mosaic_0001>
module attributes {stable_mosaic.version = 11 : i64} {
  func.func @_outer_linear_kernel(%arg0: i32, %arg1: i32, %arg2: memref<8x32xf32, #tpu.memory_space<vmem>>, %arg3: memref<32x1xf32, #tpu.memory_space<vmem>>, %arg4: memref<1x32xf32, #tpu.memory_space<vmem>>, %arg5: memref<1x32xf32, #tpu.memory_space<vmem>>, %arg6: memref<8x32xf32, #tpu.memory_space<vmem>>, %arg7: memref<32x32xf32, #tpu.memory_space<vmem>>) attributes {dimension_semantics = [#tpu.dimension_semantics<parallel>, #tpu.dimension_semantics<arbitrary>], iteration_bounds = array<i64: 1, 1>, scalar_prefetch = 0 : i64, scratch_operands = 1 : i64, tpu.core_type = #tpu.core_type<tc>, window_params = [{transform_indices = @transform_0, window_bounds = array<i64: 8, 32>}, {pipeline_mode = #tpu.pipeline_mode<synchronous>, transform_indices = @transform_1, window_bounds = array<i64: 32, 1>}, {transform_indices = @transform_2, window_bounds = array<i64: 1, 32>}, {transform_indices = @transform_3, window_bounds = array<i64: 1, 32>}, {transform_indices = @transform_4, window_bounds = array<i64: 8, 32>}]} {
    %c0_i32 = arith.constant 0 : i32
    %0 = arith.cmpi eq, %arg1, %c0_i32 : i32
    %1 = arith.extui %0 : i1 to i32
    %c0_i32_0 = arith.constant 0 : i32
    %2 = arith.cmpi ne, %1, %c0_i32_0 : i32
    scf.if %2 {
      %c0_8 = arith.constant 0 : index
      %c0_9 = arith.constant 0 : index
      %10 = vector.load %arg3[%c0_8, %c0_9] : memref<32x1xf32, #tpu.memory_space<vmem>>, vector<32x1xf32>
      %c0_10 = arith.constant 0 : index
      %c0_11 = arith.constant 0 : index
      %11 = vector.load %arg4[%c0_10, %c0_11] : memref<1x32xf32, #tpu.memory_space<vmem>>, vector<1x32xf32>
      %12 = vector.broadcast %10 : vector<32x1xf32> to vector<32x32xf32>
      %13 = vector.broadcast %11 : vector<1x32xf32> to vector<32x32xf32>
      %14 = arith.mulf %12, %13 : vector<32x32xf32>
      %cst_12 = arith.constant 8.000000e+01 : f32
      %15 = vector.broadcast %cst_12 : f32 to vector<32x32xf32>
      %16 = arith.mulf %15, %14 : vector<32x32xf32>
      %17 = math.cos %16 : vector<32x32xf32>
      %c0_13 = arith.constant 0 : index
      %c0_14 = arith.constant 0 : index
      %18 = vector.load %arg7[%c0_13, %c0_14] : memref<32x32xf32, #tpu.memory_space<vmem>>, vector<32x32xf32>
      tpu.vector_store %arg7[%c0_13, %c0_14], %17 {strides = array<i32>} : memref<32x32xf32, #tpu.memory_space<vmem>>, vector<32x32xf32>,
    } else {
    }
    %c0 = arith.constant 0 : index
    %c0_1 = arith.constant 0 : index
    %3 = vector.load %arg2[%c0, %c0_1] : memref<8x32xf32, #tpu.memory_space<vmem>>, vector<8x32xf32>
    %c0_2 = arith.constant 0 : index
    %c0_3 = arith.constant 0 : index
    %4 = vector.load %arg7[%c0_2, %c0_3] : memref<32x32xf32, #tpu.memory_space<vmem>>, vector<32x32xf32>
    %cst = arith.constant dense<0.000000e+00> : vector<8x32xf32>
    %5 = tpu.matmul %3, %4, %cst {dimension_numbers = #tpu.dot_dimension_numbers<[1], [0], [0], [1], [0, 0, 1, 1], [], []>} : vector<8x32xf32>, vector<32x32xf32>, vector<8x32xf32> -> vector<8x32xf32>
    %c0_4 = arith.constant 0 : index
    %c0_5 = arith.constant 0 : index
    %6 = vector.load %arg5[%c0_4, %c0_5] : memref<1x32xf32, #tpu.memory_space<vmem>>, vector<1x32xf32>
    %7 = vector.broadcast %6 : vector<1x32xf32> to vector<8x32xf32>
    %8 = arith.addf %5, %7 : vector<8x32xf32>
    %c0_6 = arith.constant 0 : index
    %c0_7 = arith.constant 0 : index
    %9 = vector.load %arg6[%c0_6, %c0_7] : memref<8x32xf32, #tpu.memory_space<vmem>>, vector<8x32xf32>
    tpu.vector_store %arg6[%c0_6, %c0_7], %8 {strides = array<i32>} : memref<8x32xf32, #tpu.memory_space<vmem>>, vector<8x32xf32>,
    return
  }
  func.func @transform_0(%arg0: i32, %arg1: i32) -> (i32, i32) {
    %c0_i32 = arith.constant 0 : i32
    %c0_i32_0 = arith.constant 0 : i32
    return %arg1, %c0_i32 : i32, i32
  }
  func.func @transform_1(%arg0: i32, %arg1: i32) -> (i32, i32) {
    %c0_i32 = arith.constant 0 : i32
    %c0_i32_0 = arith.constant 0 : i32
    %c0_i32_1 = arith.constant 0 : i32
    return %c0_i32, %c0_i32_0 : i32, i32
  }
  func.func @transform_2(%arg0: i32, %arg1: i32) -> (i32, i32) {
    %c0_i32 = arith.constant 0 : i32
    %c0_i32_0 = arith.constant 0 : i32
    return %c0_i32, %arg0 : i32, i32
  }
  func.func @transform_3(%arg0: i32, %arg1: i32) -> (i32, i32) {
    %c0_i32 = arith.constant 0 : i32
    %c0_i32_0 = arith.constant 0 : i32
    return %c0_i32, %arg0 : i32, i32
  }
  func.func @transform_4(%arg0: i32, %arg1: i32) -> (i32, i32) {
    %c0_i32 = arith.constant 0 : i32
    return %arg1, %arg0 : i32, i32
  }
}

</mosaic_0001>

<llo_original>
// kernel: tpu_custom_call.1
$region0: #{tpu_custom_call.1}
  #allocation0 [shape = 'u32[]', space=smem, size = 0x4, offset = 0x4, fixed_abs, tag = 'smem constant byte address 0x4 - core index']
  #allocation1 [shape = 'u32[144,128]{1,0:T(1,128)}', space=vmem, size = 0x12000, scoped, tag = 'internal scratch']
  #allocation2 [shape = 'f32[32,32]{1,0:T(8,128)}', space=vmem, size = 0x4000, scoped, tag = 'scratch operand']
  %s0 = inlined_call_operand.vmem [shape: f32[8,32], index: 0, kind: input, shape index: {}]
  %s1 = inlined_call_operand.vmem [shape: f32[32,1], index: 1, kind: input, shape index: {}]
  %s2 = inlined_call_operand.vmem [shape: f32[1,32], index: 2, kind: input, shape index: {}]
  %s3 = inlined_call_operand.vmem [shape: f32[1,32], index: 3, kind: input, shape index: {}]
  %s4 = inlined_call_operand.hbm [shape: f32[8,32], index: 4, kind: output, shape index: {}]
  %s5 = sld [smem:[#allocation0]]
  $region30: #{tpu_custom_call.1} parent=0
    _
  %s7 = ssub.s32 1, %s5
  %s8 = scalar_select 0, %s7, %s5
  $region1: #{tpu_custom_call.1} parent=0
    #allocation3 [shape = 'u8[4096]{0}', space=vmem, size = 0x1000, scoped, tag = 'output window, operand 0, single buffered']
    #allocation4 [shape = 's32[1]{0}', space=sflag, size = 0x4, scoped, tag = 'scoped memory for tpu_custom_call.1']
    %9 = vsyncpa [#allocation4], 0
    // Predicated region
    $region2: #{tpu_custom_call.1} parent=1 // pred_check
      _
    $region3: #{tpu_custom_call.1} parent=1 // pred_check_branch
      %11 = sbr.rel (0) target = $region5
    $region4: #{tpu_custom_call.1} parent=1 // pred_region
      _
    $region5: #{tpu_custom_call.1} parent=1 // pred_fallthru
      _
    // Predicated region
    $region6: #{tpu_custom_call.1} parent=1 // pred_check
      _
    $region7: #{tpu_custom_call.1} parent=1 // pred_check_branch
      %13 = sbr.rel (0) target = $region9
    $region8: #{tpu_custom_call.1} parent=1 // pred_region
      _
    $region9: #{tpu_custom_call.1} parent=1 // pred_fallthru
      _
    // Predicated region
    $region10: #{tpu_custom_call.1} parent=1 // pred_check
      _
    $region11: #{tpu_custom_call.1} parent=1 // pred_check_branch
      %15 = sbr.rel (0) target = $region13
    $region12: #{tpu_custom_call.1} parent=1 // pred_region
      _
    $region13: #{tpu_custom_call.1} parent=1 // pred_fallthru
      _
    // Predicated region
    $region14: #{tpu_custom_call.1} parent=1 // pred_check
      _
    $region15: #{tpu_custom_call.1} parent=1 // pred_check_branch
      %17 = sbr.rel (0) target = $region17
    $region16: #{tpu_custom_call.1} parent=1 // pred_region
      _
    $region17: #{tpu_custom_call.1} parent=1 // pred_fallthru
      _
    %p18 = scmp.eq.s32.totalorder 0, 0
    // Predicated region
    $region18: #{tpu_custom_call.1} parent=1 // pred_check
      %p19 = pneg %p18
    $region19: #{tpu_custom_call.1} parent=1 // pred_check_branch
      %21 = sbr.rel (%p19) target = $region21
    $region20: #{tpu_custom_call.1} parent=1 // pred_region
      %v22 = vld [vmem:[%s1] sm:$0xff]
      %v23 = vld [vmem:[%s1 + $0x8] sm:$0xff]
      %v24 = vld [vmem:[%s1 + $0x10] sm:$0xff]
      %v25 = vld [vmem:[%s1 + $0x18] sm:$0xff]
      %v26 = vld [vmem:[%s2] sm:$0x1]
      %28 = vset.pattern.permute.xlu0 0
      %29 = vperm.xlu0 %28, %v22
      %v30 = vpop.permute.xlu0 %29
      %33 = vset.pattern.permute.xlu0 0
      %34 = vperm.xlu0 %33, %v23
      %v35 = vpop.permute.xlu0 %34
      %38 = vset.pattern.permute.xlu0 0
      %39 = vperm.xlu0 %38, %v24
      %v40 = vpop.permute.xlu0 %39
      %43 = vset.pattern.permute.xlu0 0
      %44 = vperm.xlu0 %43, %v25
      %v45 = vpop.permute.xlu0 %44
      %v48 = vlaneseq
      %v49 = vshrl.u32 %v48, 7
      %v50 = vsub.s32 0, %v49
      %v51 = vrot.slane %v26, %v50
      %v53 = vmul.f32 %v30, %v51
      %v54 = vmul.f32 %v35, %v51
      %v55 = vmul.f32 %v40, %v51
      %v56 = vmul.f32 %v45, %v51
      %v57 = vmul.f32 %v53, 80.0
      %v58 = vmul.f32 %v54, 80.0
      %v59 = vmul.f32 %v55, 80.0
      %v60 = vmul.f32 %v56, 80.0
      %v61 = vand.u32 2147483647, %v57
      %vm62 = vcmp.le.f32.partialorder %v61, 0.7853982
      %vm63 = vcmp.lt.s32.totalorder %v57, 0
      %v64 = vand.u32 %v57, 2139095040
      %v65 = vshrl.u32 %v64, 23
      %v66 = vsub.s32 %v65, 127
      %v67 = vand.u32 2147483647, %v57
      %v68 = vand.u32 %v67, 8388607
      %v69 = vor.u32 %v68, 8388608
      %v70 = vsub.s32 0, %v69
      %v71 = vadd.s32 %v66, 1
      %vm72 = vcmp.gt.s32.totalorder %v71, 0
      %v73 = vsel %vm72, %v71, 0
      %v74 = vshrl.u32 %v73, 5
      %v75 = vand.u32 %v73, 31
      %v76 = vsub.s32 32, %v75
      %v77 = vshrl.u32 683565275, %v76
      %v78 = vshll.u32 683565275, %v75
      %v79 = vshrl.u32 2475754826, %v76
      %v80 = vor.u32 %v78, %v79
      %v81 = vshll.u32 2475754826, %v75
      %v82 = vshrl.u32 2131351028, %v76
      %v83 = vor.u32 %v81, %v82
      %v84 = vshll.u32 2131351028, %v75
      %v85 = vshrl.u32 2102212464, %v76
      %v86 = vor.u32 %v84, %v85
      %v87 = vshll.u32 2102212464, %v75
      %v88 = vshrl.u32 920167782, %v76
      %v89 = vor.u32 %v87, %v88
      %v90 = vshll.u32 920167782, %v75
      %v91 = vshrl.u32 1326507024, %v76
      %v92 = vor.u32 %v90, %v91
      %vm93 = vcmp.lt.s32.totalorder %v74, 1
      %vm94 = vcmp.lt.s32.totalorder %v74, 2
      %vm95 = vcmp.lt.s32.totalorder %v74, 3
      %vm96 = vcmp.lt.s32.totalorder %v74, 4
      %v97 = vsel %vm93, %v77, %v80
      %v98 = vsel %vm96, %v86, 2102212464
      %v99 = vsel %vm95, %v83, %v98
      %v100 = vsel %vm94, %v97, %v99
      %v101 = vsel %vm93, %v80, %v83
      %v102 = vsel %vm96, %v89, 920167782
      %v103 = vsel %vm95, %v86, %v102
      %v104 = vsel %vm94, %v101, %v103
      %v105 = vsel %vm93, %v83, %v86
      %v106 = vsel %vm96, %v92, 1326507024
      %v107 = vsel %vm95, %v89, %v106
      %v108 = vsel %vm94, %v105, %v107
      %v109 = vshll.u32 %v69, 8
      %v110 = vmul.u32.u64.compose %v109, %v108
      %v111 = vextract.low.u32 %v110
      %v112 = vextract.high.u32 %v110
      %v113 = vmul.u32.u64.compose %v109, %v104
      %v114 = vextract.low.u32 %v113
      %v115 = vextract.high.u32 %v113
      %v116 = vmul.u32 %v109, %v100
      %v117 = vadd.s32 %v112, %v114
      %vm118 = vc.u32 %v112, %v114
      %v119 = vadd.s32 %v115, 1
      %v120 = vsel %vm118, %v119, %v115
      %v121 = vadd.s32 %v116, %v120
      %v122 = vadd.s32 %v121, 536870912
      %v123 = vshrl.u32 %v122, 30
      %v124 = vshll.u32 %v123, 30
      %v125 = vsub.s32 %v121, %v124
      %vm126 = vcmp.lt.s32.totalorder %v125, 0
      %v127 = vsub.s32 0, %v125
      %v128 = vsel %vm126, %v127, %v125
      %v129 = vclz %v128
      %v130 = vsub.s32 %v129, 2
      %vm131 = vcmp.gt.s32.totalorder 0, %v130
      %v132 = vsel %vm131, 0, %v130
      %v133 = vsub.s32 32, %v132
      %v134 = vshll.u32 %v125, %v132
      %v135 = vshrl.u32 %v117, %v133
      %v136 = vor.u32 %v134, %v135
      %v137 = vsub.s32 4294967266, %v132
      %v138 = vadd.s32 %v137, 127
      %v139 = vshll.u32 %v138, 23
      %v140 = vor.u32 4788187, %v139
      %v141 = vand.u32 2147483647, %v140
      %v143 = vcvt.s32.f32 %v136
      %v144 = vmul.f32 %v143, %v141
      %v145 = vxor.u32 %v144, 2147483648
      %v146 = vsel %vm63, %v145, %v144
      %v147 = vsub.s32 4, %v123
      %v148 = vsel %vm63, %v147, %v123
      %v149 = vsel %vm62, %v57, %v146
      %v150 = vsel %vm62, 0, %v148
      %v151 = vcosq.f32.pop %v149
      %v152 = vsinq.f32.pop %v149
      %vm153 = vweird.f32 %v57
      %v154 = vand.u32 %v150, 3
      %vm155 = vcmp.lt.s32.totalorder %v154, 2
      %vm156 = vcmp.eq.s32.totalorder %v154, 0
      %v157 = vxor.u32 %v152, 2147483648
      %v158 = vsel %vm156, %v151, %v157
      %vm159 = vcmp.eq.s32.totalorder %v154, 2
      %v160 = vxor.u32 %v151, 2147483648
      %v161 = vsel %vm159, %v160, %v152
      %v162 = vsel %vm155, %v158, %v161
      %v163 = vsel %vm153, nan, %v162
      %v164 = vand.u32 2147483647, %v58
      %vm165 = vcmp.le.f32.partialorder %v164, 0.7853982
      %vm166 = vcmp.lt.s32.totalorder %v58, 0
      %v167 = vand.u32 %v58, 2139095040
      %v168 = vshrl.u32 %v167, 23
      %v169 = vsub.s32 %v168, 127
      %v170 = vand.u32 2147483647, %v58
      %v171 = vand.u32 %v170, 8388607
      %v172 = vor.u32 %v171, 8388608
      %v173 = vsub.s32 0, %v172
      %v174 = vadd.s32 %v169, 1
      %vm175 = vcmp.gt.s32.totalorder %v174, 0
      %v176 = vsel %vm175, %v174, 0
      %v177 = vshrl.u32 %v176, 5
      %v178 = vand.u32 %v176, 31
      %v179 = vsub.s32 32, %v178
      %v180 = vshrl.u32 683565275, %v179
      %v181 = vshll.u32 683565275, %v178
      %v182 = vshrl.u32 2475754826, %v179
      %v183 = vor.u32 %v181, %v182
      %v184 = vshll.u32 2475754826, %v178
      %v185 = vshrl.u32 2131351028, %v179
      %v186 = vor.u32 %v184, %v185
      %v187 = vshll.u32 2131351028, %v178
      %v188 = vshrl.u32 2102212464, %v179
      %v189 = vor.u32 %v187, %v188
      %v190 = vshll.u32 2102212464, %v178
      %v191 = vshrl.u32 920167782, %v179
      %v192 = vor.u32 %v190, %v191
      %v193 = vshll.u32 920167782, %v178
      %v194 = vshrl.u32 1326507024, %v179
      %v195 = vor.u32 %v193, %v194
      %vm196 = vcmp.lt.s32.totalorder %v177, 1
      %vm197 = vcmp.lt.s32.totalorder %v177, 2
      %vm198 = vcmp.lt.s32.totalorder %v177, 3
      %vm199 = vcmp.lt.s32.totalorder %v177, 4
      %v200 = vsel %vm196, %v180, %v183
      %v201 = vsel %vm199, %v189, 2102212464
      %v202 = vsel %vm198, %v186, %v201
      %v203 = vsel %vm197, %v200, %v202
      %v204 = vsel %vm196, %v183, %v186
      %v205 = vsel %vm199, %v192, 920167782
      %v206 = vsel %vm198, %v189, %v205
      %v207 = vsel %vm197, %v204, %v206
      %v208 = vsel %vm196, %v186, %v189
      %v209 = vsel %vm199, %v195, 1326507024
      %v210 = vsel %vm198, %v192, %v209
      %v211 = vsel %vm197, %v208, %v210
      %v212 = vshll.u32 %v172, 8
      %v213 = vmul.u32.u64.compose %v212, %v211
      %v214 = vextract.low.u32 %v213
      %v215 = vextract.high.u32 %v213
      %v216 = vmul.u32.u64.compose %v212, %v207
      %v217 = vextract.low.u32 %v216
      %v218 = vextract.high.u32 %v216
      %v219 = vmul.u32 %v212, %v203
      %v220 = vadd.s32 %v215, %v217
      %vm221 = vc.u32 %v215, %v217
      %v222 = vadd.s32 %v218, 1
      %v223 = vsel %vm221, %v222, %v218
      %v224 = vadd.s32 %v219, %v223
      %v225 = vadd.s32 %v224, 536870912
      %v226 = vshrl.u32 %v225, 30
      %v227 = vshll.u32 %v226, 30
      %v228 = vsub.s32 %v224, %v227
      %vm229 = vcmp.lt.s32.totalorder %v228, 0
      %v230 = vsub.s32 0, %v228
      %v231 = vsel %vm229, %v230, %v228
      %v232 = vclz %v231
      %v233 = vsub.s32 %v232, 2
      %vm234 = vcmp.gt.s32.totalorder 0, %v233
      %v235 = vsel %vm234, 0, %v233
      %v236 = vsub.s32 32, %v235
      %v237 = vshll.u32 %v228, %v235
      %v238 = vshrl.u32 %v220, %v236
      %v239 = vor.u32 %v237, %v238
      %v240 = vsub.s32 4294967266, %v235
      %v241 = vadd.s32 %v240, 127
      %v242 = vshll.u32 %v241, 23
      %v243 = vor.u32 4788187, %v242
      %v244 = vand.u32 2147483647, %v243
      %v246 = vcvt.s32.f32 %v239
      %v247 = vmul.f32 %v246, %v244
      %v248 = vxor.u32 %v247, 2147483648
      %v249 = vsel %vm166, %v248, %v247
      %v250 = vsub.s32 4, %v226
      %v251 = vsel %vm166, %v250, %v226
      %v252 = vsel %vm165, %v58, %v249
      %v253 = vsel %vm165, 0, %v251
      %v254 = vcosq.f32.pop %v252
      %v255 = vsinq.f32.pop %v252
      %vm256 = vweird.f32 %v58
      %v257 = vand.u32 %v253, 3
      %vm258 = vcmp.lt.s32.totalorder %v257, 2
      %vm259 = vcmp.eq.s32.totalorder %v257, 0
      %v260 = vxor.u32 %v255, 2147483648
      %v261 = vsel %vm259, %v254, %v260
      %vm262 = vcmp.eq.s32.totalorder %v257, 2
      %v263 = vxor.u32 %v254, 2147483648
      %v264 = vsel %vm262, %v263, %v255
      %v265 = vsel %vm258, %v261, %v264
      %v266 = vsel %vm256, nan, %v265
      %v267 = vand.u32 2147483647, %v59
      %vm268 = vcmp.le.f32.partialorder %v267, 0.7853982
      %vm269 = vcmp.lt.s32.totalorder %v59, 0
      %v270 = vand.u32 %v59, 2139095040
      %v271 = vshrl.u32 %v270, 23
      %v272 = vsub.s32 %v271, 127
      %v273 = vand.u32 2147483647, %v59
      %v274 = vand.u32 %v273, 8388607
      %v275 = vor.u32 %v274, 8388608
      %v276 = vsub.s32 0, %v275
      %v277 = vadd.s32 %v272, 1
      %vm278 = vcmp.gt.s32.totalorder %v277, 0
      %v279 = vsel %vm278, %v277, 0
      %v280 = vshrl.u32 %v279, 5
      %v281 = vand.u32 %v279, 31
      %v282 = vsub.s32 32, %v281
      %v283 = vshrl.u32 683565275, %v282
      %v284 = vshll.u32 683565275, %v281
      %v285 = vshrl.u32 2475754826, %v282
      %v286 = vor.u32 %v284, %v285
      %v287 = vshll.u32 2475754826, %v281
      %v288 = vshrl.u32 2131351028, %v282
      %v289 = vor.u32 %v287, %v288
      %v290 = vshll.u32 2131351028, %v281
      %v291 = vshrl.u32 2102212464, %v282
      %v292 = vor.u32 %v290, %v291
      %v293 = vshll.u32 2102212464, %v281
      %v294 = vshrl.u32 920167782, %v282
      %v295 = vor.u32 %v293, %v294
      %v296 = vshll.u32 920167782, %v281
      %v297 = vshrl.u32 1326507024, %v282
      %v298 = vor.u32 %v296, %v297
      %vm299 = vcmp.lt.s32.totalorder %v280, 1
      %vm300 = vcmp.lt.s32.totalorder %v280, 2
      %vm301 = vcmp.lt.s32.totalorder %v280, 3
      %vm302 = vcmp.lt.s32.totalorder %v280, 4
      %v303 = vsel %vm299, %v283, %v286
      %v304 = vsel %vm302, %v292, 2102212464
      %v305 = vsel %vm301, %v289, %v304
      %v306 = vsel %vm300, %v303, %v305
      %v307 = vsel %vm299, %v286, %v289
      %v308 = vsel %vm302, %v295, 920167782
      %v309 = vsel %vm301, %v292, %v308
      %v310 = vsel %vm300, %v307, %v309
      %v311 = vsel %vm299, %v289, %v292
      %v312 = vsel %vm302, %v298, 1326507024
      %v313 = vsel %vm301, %v295, %v312
      %v314 = vsel %vm300, %v311, %v313
      %v315 = vshll.u32 %v275, 8
      %v316 = vmul.u32.u64.compose %v315, %v314
      %v317 = vextract.low.u32 %v316
      %v318 = vextract.high.u32 %v316
      %v319 = vmul.u32.u64.compose %v315, %v310
      %v320 = vextract.low.u32 %v319
      %v321 = vextract.high.u32 %v319
      %v322 = vmul.u32 %v315, %v306
      %v323 = vadd.s32 %v318, %v320
      %vm324 = vc.u32 %v318, %v320
      %v325 = vadd.s32 %v321, 1
      %v326 = vsel %vm324, %v325, %v321
      %v327 = vadd.s32 %v322, %v326
      %v328 = vadd.s32 %v327, 536870912
      %v329 = vshrl.u32 %v328, 30
      %v330 = vshll.u32 %v329, 30
      %v331 = vsub.s32 %v327, %v330
      %vm332 = vcmp.lt.s32.totalorder %v331, 0
      %v333 = vsub.s32 0, %v331
      %v334 = vsel %vm332, %v333, %v331
      %v335 = vclz %v334
      %v336 = vsub.s32 %v335, 2
      %vm337 = vcmp.gt.s32.totalorder 0, %v336
      %v338 = vsel %vm337, 0, %v336
      %v339 = vsub.s32 32, %v338
      %v340 = vshll.u32 %v331, %v338
      %v341 = vshrl.u32 %v323, %v339
      %v342 = vor.u32 %v340, %v341
      %v343 = vsub.s32 4294967266, %v338
      %v344 = vadd.s32 %v343, 127
      %v345 = vshll.u32 %v344, 23
      %v346 = vor.u32 4788187, %v345
      %v347 = vand.u32 2147483647, %v346
      %v349 = vcvt.s32.f32 %v342
      %v350 = vmul.f32 %v349, %v347
      %v351 = vxor.u32 %v350, 2147483648
      %v352 = vsel %vm269, %v351, %v350
      %v353 = vsub.s32 4, %v329
      %v354 = vsel %vm269, %v353, %v329
      %v355 = vsel %vm268, %v59, %v352
      %v356 = vsel %vm268, 0, %v354
      %v357 = vcosq.f32.pop %v355
      %v358 = vsinq.f32.pop %v355
      %vm359 = vweird.f32 %v59
      %v360 = vand.u32 %v356, 3
      %vm361 = vcmp.lt.s32.totalorder %v360, 2
      %vm362 = vcmp.eq.s32.totalorder %v360, 0
      %v363 = vxor.u32 %v358, 2147483648
      %v364 = vsel %vm362, %v357, %v363
      %vm365 = vcmp.eq.s32.totalorder %v360, 2
      %v366 = vxor.u32 %v357, 2147483648
      %v367 = vsel %vm365, %v366, %v358
      %v368 = vsel %vm361, %v364, %v367
      %v369 = vsel %vm359, nan, %v368
      %v370 = vand.u32 2147483647, %v60
      %vm371 = vcmp.le.f32.partialorder %v370, 0.7853982
      %vm372 = vcmp.lt.s32.totalorder %v60, 0
      %v373 = vand.u32 %v60, 2139095040
      %v374 = vshrl.u32 %v373, 23
      %v375 = vsub.s32 %v374, 127
      %v376 = vand.u32 2147483647, %v60
      %v377 = vand.u32 %v376, 8388607
      %v378 = vor.u32 %v377, 8388608
      %v379 = vsub.s32 0, %v378
      %v380 = vadd.s32 %v375, 1
      %vm381 = vcmp.gt.s32.totalorder %v380, 0
      %v382 = vsel %vm381, %v380, 0
      %v383 = vshrl.u32 %v382, 5
      %v384 = vand.u32 %v382, 31
      %v385 = vsub.s32 32, %v384
      %v386 = vshrl.u32 683565275, %v385
      %v387 = vshll.u32 683565275, %v384
      %v388 = vshrl.u32 2475754826, %v385
      %v389 = vor.u32 %v387, %v388
      %v390 = vshll.u32 2475754826, %v384
      %v391 = vshrl.u32 2131351028, %v385
      %v392 = vor.u32 %v390, %v391
      %v393 = vshll.u32 2131351028, %v384
      %v394 = vshrl.u32 2102212464, %v385
      %v395 = vor.u32 %v393, %v394
      %v396 = vshll.u32 2102212464, %v384
      %v397 = vshrl.u32 920167782, %v385
      %v398 = vor.u32 %v396, %v397
      %v399 = vshll.u32 920167782, %v384
      %v400 = vshrl.u32 1326507024, %v385
      %v401 = vor.u32 %v399, %v400
      %vm402 = vcmp.lt.s32.totalorder %v383, 1
      %vm403 = vcmp.lt.s32.totalorder %v383, 2
      %vm404 = vcmp.lt.s32.totalorder %v383, 3
      %vm405 = vcmp.lt.s32.totalorder %v383, 4
      %v406 = vsel %vm402, %v386, %v389
      %v407 = vsel %vm405, %v395, 2102212464
      %v408 = vsel %vm404, %v392, %v407
      %v409 = vsel %vm403, %v406, %v408
      %v410 = vsel %vm402, %v389, %v392
      %v411 = vsel %vm405, %v398, 920167782
      %v412 = vsel %vm404, %v395, %v411
      %v413 = vsel %vm403, %v410, %v412
      %v414 = vsel %vm402, %v392, %v395
      %v415 = vsel %vm405, %v401, 1326507024
      %v416 = vsel %vm404, %v398, %v415
      %v417 = vsel %vm403, %v414, %v416
      %v418 = vshll.u32 %v378, 8
      %v419 = vmul.u32.u64.compose %v418, %v417
      %v420 = vextract.low.u32 %v419
      %v421 = vextract.high.u32 %v419
      %v422 = vmul.u32.u64.compose %v418, %v413
      %v423 = vextract.low.u32 %v422
      %v424 = vextract.high.u32 %v422
      %v425 = vmul.u32 %v418, %v409
      %v426 = vadd.s32 %v421, %v423
      %vm427 = vc.u32 %v421, %v423
      %v428 = vadd.s32 %v424, 1
      %v429 = vsel %vm427, %v428, %v424
      %v430 = vadd.s32 %v425, %v429
      %v431 = vadd.s32 %v430, 536870912
      %v432 = vshrl.u32 %v431, 30
      %v433 = vshll.u32 %v432, 30
      %v434 = vsub.s32 %v430, %v433
      %vm435 = vcmp.lt.s32.totalorder %v434, 0
      %v436 = vsub.s32 0, %v434
      %v437 = vsel %vm435, %v436, %v434
      %v438 = vclz %v437
      %v439 = vsub.s32 %v438, 2
      %vm440 = vcmp.gt.s32.totalorder 0, %v439
      %v441 = vsel %vm440, 0, %v439
      %v442 = vsub.s32 32, %v441
      %v443 = vshll.u32 %v434, %v441
      %v444 = vshrl.u32 %v426, %v442
      %v445 = vor.u32 %v443, %v444
      %v446 = vsub.s32 4294967266, %v441
      %v447 = vadd.s32 %v446, 127
      %v448 = vshll.u32 %v447, 23
      %v449 = vor.u32 4788187, %v448
      %v450 = vand.u32 2147483647, %v449
      %v452 = vcvt.s32.f32 %v445
      %v453 = vmul.f32 %v452, %v450
      %v454 = vxor.u32 %v453, 2147483648
      %v455 = vsel %vm372, %v454, %v453
      %v456 = vsub.s32 4, %v432
      %v457 = vsel %vm372, %v456, %v432
      %v458 = vsel %vm371, %v60, %v455
      %v459 = vsel %vm371, 0, %v457
      %v460 = vcosq.f32.pop %v458
      %v461 = vsinq.f32.pop %v458
      %vm462 = vweird.f32 %v60
      %v463 = vand.u32 %v459, 3
      %vm464 = vcmp.lt.s32.totalorder %v463, 2
      %vm465 = vcmp.eq.s32.totalorder %v463, 0
      %v466 = vxor.u32 %v461, 2147483648
      %v467 = vsel %vm465, %v460, %v466
      %vm468 = vcmp.eq.s32.totalorder %v463, 2
      %v469 = vxor.u32 %v460, 2147483648
      %v470 = vsel %vm468, %v469, %v461
      %v471 = vsel %vm464, %v467, %v470
      %v472 = vsel %vm462, nan, %v471
      %vm473 = vcmask 261120
      %474 = vst.msk [vmem:[#allocation2] sm:$0xff] %vm473, %v163
      %475 = vst.msk [vmem:[#allocation2 + $0x8] sm:$0xff] %vm473, %v266
      %476 = vst.msk [vmem:[#allocation2 + $0x10] sm:$0xff] %vm473, %v369
      %477 = vst.msk [vmem:[#allocation2 + $0x18] sm:$0xff] %vm473, %v472
    $region21: #{tpu_custom_call.1} parent=1 // pred_fallthru
      _
    %v478 = vld [vmem:[%s0] sm:$0xff]
    %v479 = vld [vmem:[#allocation2] sm:$0xff]
    %v480 = vld [vmem:[#allocation2 + $0x8] sm:$0xff]
    %v481 = vld [vmem:[#allocation2 + $0x10] sm:$0xff]
    %v482 = vld [vmem:[#allocation2 + $0x18] sm:$0xff]
    %v483 = vld [vmem:[%s3] sm:$0x1]
    %v485 = vlaneseq
    %v486 = vshrl.u32 %v485, 7
    %v487 = vsub.s32 0, %v486
    %v488 = vrot.slane %v483, %v487
    %vm490 = vcmask 261120
    %v492 = vsel %vm490, %v478, 0
    %494 = vmatprep.subr.mxu0 0.0
    %495 = vmatpush1.msra.mxu0 %v479
    %496 = vmatprep.subr.mxu0 0.0
    %497 = vmatpush1.msra.mxu0 %v480
    %498 = vmatprep.subr.mxu0 0.0
    %499 = vmatpush1.msra.mxu0 %v481
    %500 = vmatprep.subr.mxu0 0.0
    %501 = vmatpush1.msra.mxu0 %v482
    %502 = vmatprep.subr.mxu0 0.0
    %503 = vmatpush1.msra.mxu0 0.0
    %504 = vmatprep.subr.mxu0 0.0
    %505 = vmatpush1.msra.mxu0 0.0
    %506 = vmatprep.subr.mxu0 0.0
    %507 = vmatpush1.msra.mxu0 0.0
    %508 = vmatprep.subr.mxu0 0.0
    %509 = vmatpush1.msra.mxu0 0.0
    %510 = vmatprep.subr.mxu0 0.0
    %511 = vmatpush1.msra.mxu0 0.0
    %512 = vmatprep.subr.mxu0 0.0
    %513 = vmatpush1.msra.mxu0 0.0
    %514 = vmatprep.subr.mxu0 0.0
    %515 = vmatpush1.msra.mxu0 0.0
    %516 = vmatprep.subr.mxu0 0.0
    %517 = vmatpush1.msra.mxu0 0.0
    %518 = vmatprep.subr.mxu0 0.0
    %519 = vmatpush1.msra.mxu0 0.0
    %520 = vmatprep.subr.mxu0 0.0
    %521 = vmatpush1.msra.mxu0 0.0
    %522 = vmatprep.subr.mxu0 0.0
    %523 = vmatpush1.msra.mxu0 0.0
    %524 = vmatprep.subr.mxu0 0.0
    %525 = vmatpush1.msra.mxu0 0.0
    %526 = vmatprep.subr.mxu0 0.0
    %527 = vmatpush1.msra.mxu0 0.0
    %528 = vmatprep.subr.mxu0 0.0
    %529 = vmatpush1.msra.mxu0 0.0
    %530 = vmatprep.subr.mxu0 0.0
    %531 = vmatpush1.msra.mxu0 0.0
    %532 = vmatprep.subr.mxu0 0.0
    %533 = vmatpush1.msra.mxu0 0.0
    %534 = vmatprep.subr.mxu0 0.0
    %535 = vmatpush1.msra.mxu0 0.0
    %536 = vmatprep.subr.mxu0 0.0
    %537 = vmatpush1.msra.mxu0 0.0
    %538 = vmatprep.subr.mxu0 0.0
    %539 = vmatpush1.msra.mxu0 0.0
    %540 = vmatprep.subr.mxu0 0.0
    %541 = vmatpush1.msra.mxu0 0.0
    %542 = vmatprep.subr.mxu0 0.0
    %543 = vmatpush1.msra.mxu0 0.0
    %544 = vmatprep.subr.mxu0 0.0
    %545 = vmatpush1.msra.mxu0 0.0
    %546 = vmatprep.subr.mxu0 0.0
    %547 = vmatpush1.msra.mxu0 0.0
    %548 = vmatprep.subr.mxu0 0.0
    %549 = vmatpush1.msra.mxu0 0.0
    %550 = vmatprep.subr.mxu0 0.0
    %551 = vmatpush1.msra.mxu0 0.0
    %552 = vmatprep.subr.mxu0 0.0
    %553 = vmatpush1.msra.mxu0 0.0
    %554 = vmatprep.subr.mxu0 0.0
    %555 = vmatpush1.msra.mxu0 0.0
    %556 = vmatprep.subr.mxu0 0.0
    %557 = vmatpush1.msra.mxu0 0.0
    %558 = vmatprep.mubr.f32.mxu0 0.0
    %559 = vmatmul.mubr.f32.gmra.mrb[0].mxu0 %v492
    %v560 = vpop.f32.mrb[0].mxu0
    %v561 = vadd.f32 %v488, %v560
    %v562 = vpop.f32.mrb[0].mxu0
    %563 = vdwg.mxu0
    %564 = vst.msk [vmem:[#allocation3] sm:$0xff] %vm490, %v561
    // Predicated region
    $region22: #{tpu_custom_call.1} parent=1 // pred_check
      _
    $region23: #{tpu_custom_call.1} parent=1 // pred_check_branch
      %566 = sbr.rel (0) target = $region25
    $region24: #{tpu_custom_call.1} parent=1 // pred_region
      %s568 = ssub.s32 128, 128
      %569 = vsyncadd [#allocation4], %s568
      %s571 = sshll.u32 [#allocation3], 4
      %s572 = int_to_ptr.vmem [resolvable:$true] %s571
      %574 = dma.vmem_to_hbm [thread:$0]  %s572, 128, %s4, [#allocation4]
    $region25: #{tpu_custom_call.1} parent=1 // pred_fallthru
      _
    // Predicated region
    $region26: #{tpu_custom_call.1} parent=1 // pred_check
      _
    $region27: #{tpu_custom_call.1} parent=1 // pred_check_branch
      %576 = sbr.rel (0) target = $region29
    $region28: #{tpu_custom_call.1} parent=1 // pred_region
      %577 = dma.done [#allocation4], 128
    $region29: #{tpu_custom_call.1} parent=1 // pred_fallthru
      _
    %578 = vsyncpa [#allocation4], 1

</llo_original>
